<compile_context>
chip_gen: v6e
topology: v6e:2x2x1
jax: 0.10.0
libtpu: 0.0.40
codegen_flags: <defaults>
</compile_context>

<pallas_src>
import jax
import jax.numpy as jnp
from jax import lax
from jax.experimental import pallas as pl
from jax.experimental.pallas import tpu as pltpu


def _round_up(n, k):
    return ((n + k - 1) // k) * k


# ---------------------------------------------------------------------------
# Pallas kernel: per-mode complex contraction over input channels.
#   a_ref: (2, Cin, B, TM)   axis 0 = [re, im]
#   w_ref: (2, Cin, Ot, TM)
#   o_ref: (2, B,  Ot, TM)
# ---------------------------------------------------------------------------
def _compl_mul_kernel(a_ref, w_ref, o_ref):
    I = a_ref.shape[1]
    B = a_ref.shape[2]
    Ot = w_ref.shape[2]
    TM = a_ref.shape[3]

    def body(i, acc):
        acc_re, acc_im = acc
        ar = a_ref[0, i][:, None, :]        # (B, 1, TM)
        ai = a_ref[1, i][:, None, :]
        wr = w_ref[0, i][None, :, :]        # (1, Ot, TM)
        wi = w_ref[1, i][None, :, :]
        acc_re = acc_re + (ar * wr - ai * wi)
        acc_im = acc_im + (ar * wi + ai * wr)
        return (acc_re, acc_im)

    init = (jnp.zeros((B, Ot, TM), jnp.float32),
            jnp.zeros((B, Ot, TM), jnp.float32))
    acc_re, acc_im = lax.fori_loop(0, I, body, init, unroll=min(int(I), 8))

    o_ref[0] = acc_re
    o_ref[1] = acc_im


def _vmem_capacity_bytes():
    try:
        return int(pltpu.get_tpu_info().vmem_capacity_bytes)
    except Exception:
        return 64 * 2**20  # conservative (v7x-sized) fallback


def _choose_tiles(B, Cin, Cout, Mp, vmem_cap):
    """Pick (tile_m, tile_o, block_bytes) so the double-buffered block working
    set fits ~70% of physical VMEM and the accumulator stays near the vreg file."""
    budget = int(vmem_cap * 0.7)

    m_cands = [t for t in (1024, 512, 384, 256, 128) if Mp % t == 0]
    if not m_cands:
        m_cands = [128]

    # Cout tile must be a multiple of 8 or the full Cout (BlockSpec constraint).
    o_set = {Cout}
    for o in (64, 32, 16, 8):
        if o < Cout and Cout % o == 0:
            o_set.add(o)
    o_cands = sorted(o_set, reverse=True)

    best = None
    for tm in m_cands:                       # prefer large lane-dense M tiles
        for ot in o_cands:                   # then the largest channel tile
            acc_bytes = 2 * B * ot * tm * 4
            if acc_bytes > 128 * 1024:       # bound the in-kernel accumulator
                continue
            blk = 4 * tm * 2 * (B * Cin + Cin * ot + B * ot)
            if 2 * blk <= budget:
                return tm, ot, blk
            if best is None or blk < best[2]:
                best = (tm, ot, blk)
    if best is not None:
        return best
    tm = m_cands[-1]
    ot = o_cands[-1]
    blk = 4 * tm * 2 * (B * Cin + Cin * ot + B * ot)
    return tm, ot, blk


def compl_mul3d_pallas(a_packed, w_packed, tile_m, tile_o, vmem_limit):
    """a_packed: (4, 2, Cin, B, Mp), w_packed: (4, 2, Cin, Cout, Mp).
    Returns (4, 2, B, Cout, Mp) float32."""
    C4, _, I, B, Mp = a_packed.shape
    Cout = w_packed.shape[3]
    num_m = Mp // tile_m
    num_o = Cout // tile_o

    # Grid order (corner, M, Cout): the activation block index is constant over
    # the inner Cout axis, so Pallas skips its redundant DMAs.  All axes are
    # independent -> "parallel" (megacore-shardable on v7x).
    spec_a = pl.BlockSpec((pl.Squeezed(), 2, I, B, tile_m),
                          lambda c, m, o: (c, 0, 0, 0, m))
    spec_w = pl.BlockSpec((pl.Squeezed(), 2, I, tile_o, tile_m),
                          lambda c, m, o: (c, 0, 0, o, m))
    spec_o = pl.BlockSpec((pl.Squeezed(), 2, B, tile_o, tile_m),
                          lambda c, m, o: (c, 0, 0, o, m))

    return pl.pallas_call(
        _compl_mul_kernel,
        grid=(C4, num_m, num_o),
        in_specs=[spec_a, spec_w],
        out_specs=spec_o,
        out_shape=jax.ShapeDtypeStruct((C4, 2, B, Cout, Mp), jnp.float32),
        compiler_params=pltpu.CompilerParams(
            dimension_semantics=("parallel", "parallel", "parallel"),
            vmem_limit_bytes=vmem_limit,
        ),
    )(a_packed, w_packed)


# ---------------------------------------------------------------------------
# Weight packing — done ONCE at parameter setup, not per forward call.
# ---------------------------------------------------------------------------
def pack_spectral_weights(w_re, w_im):
    """w_re/w_im: (4, Cin, Cout, m1, m2, m3) -> (4, 2, Cin, Cout, Mp) float32."""
    C4, Cin, Cout, m1, m2, m3 = w_re.shape
    M = m1 * m2 * m3
    Mp = _round_up(M, 128)
    w = jnp.stack([w_re, w_im], axis=1).reshape(C4, 2, Cin, Cout, M)
    w = w.astype(jnp.float32)
    if Mp > M:
        w = jnp.pad(w, ((0, 0), (0, 0), (0, 0), (0, 0), (0, Mp - M)))
    return w


# ---------------------------------------------------------------------------
# SpectralConv3d forward
# ---------------------------------------------------------------------------
def spectral_conv3d(x, w_packed, modes1, modes2, modes3):
    """x: (B, Cin, X, Y, Z) float32;  w_packed: (4, 2, Cin, Cout, Mp) float32."""
    B, Cin, SX, SY, SZ = x.shape
    Cout = w_packed.shape[3]
    Mp = w_packed.shape[4]
    M = modes1 * modes2 * modes3
    assert Mp == _round_up(M, 128), "w_packed was packed for different modes"

    x_ft = jnp.fft.rfftn(x, axes=(2, 3, 4))          # (B, Cin, SX, SY, SZ//2+1) c64
    ZR = x_ft.shape[4]
    z_dim = min(ZR, modes3)

    def corner(sl1, sl2):
        c = x_ft[:, :, sl1, sl2, :z_dim]
        if modes3 - z_dim > 0:                       # zero-pad z to modes3 (torch `coeff`)
            c = jnp.pad(c, ((0, 0), (0, 0), (0, 0), (0, 0), (0, modes3 - z_dim)))
        return c

    corners = jnp.stack(
        [
            corner(slice(0, modes1), slice(0, modes2)),
            corner(slice(-modes1, None), slice(0, modes2)),
            corner(slice(0, modes1), slice(-modes2, None)),
            corner(slice(-modes1, None), slice(-modes2, None)),
        ],
        axis=0,
    )  # (4, B, Cin, m1, m2, m3) complex64

    # Pack activations: re/im on a leading axis, Cin before B (so the kernel's
    # channel loop indexes a leading, untiled dim), lane axis = M padded to 128.
    a = jnp.stack([jnp.real(corners), jnp.imag(corners)], axis=1)   # (4,2,B,Cin,m1,m2,m3)
    a = a.reshape(4, 2, B, Cin, M).astype(jnp.float32)
    a = jnp.transpose(a, (0, 1, 3, 2, 4))                           # (4,2,Cin,B,M)
    if Mp > M:
        a = jnp.pad(a, ((0, 0), (0, 0), (0, 0), (0, 0), (0, Mp - M)))

    vmem_cap = _vmem_capacity_bytes()
    tile_m, tile_o, blk_bytes = _choose_tiles(B, Cin, Cout, Mp, vmem_cap)
    vmem_limit = int(min(vmem_cap, max(32 * 2**20, 2 * blk_bytes + (4 << 20))))

    o_packed = compl_mul3d_pallas(a, w_packed, tile_m, tile_o, vmem_limit)
    out = (o_packed[:, 0, :, :, :M] + 1j * o_packed[:, 1, :, :, :M]).astype(jnp.complex64)
    out = out.reshape(4, B, Cout, modes1, modes2, modes3)

    # Scatter the 4 corner blocks into out_ft (B, Cout, SX, SY, modes3).
    # If 2*modes1 > SX or 2*modes2 > SY the corner writes overlap with
    # last-write-wins, matching the PyTorch module's behavior.
    out_ft = jnp.zeros((B, Cout, SX, SY, modes3), dtype=jnp.complex64)
    out_ft = out_ft.at[:, :, :modes1, :modes2, :].set(out[0])
    out_ft = out_ft.at[:, :, -modes1:, :modes2, :].set(out[1])
    out_ft = out_ft.at[:, :, :modes1, -modes2:, :].set(out[2])
    out_ft = out_ft.at[:, :, -modes1:, -modes2:, :].set(out[3])

    # torch.fft.irfftn(out_ft, s=(SX,SY,SZ)) zero-pads / crops last axis to SZ//2+1
    zr_full = SZ // 2 + 1
    if modes3 < zr_full:
        out_ft = jnp.pad(out_ft, ((0, 0), (0, 0), (0, 0), (0, 0), (0, zr_full - modes3)))
    else:
        out_ft = out_ft[..., :zr_full]

    y = jnp.fft.irfftn(out_ft, s=(SX, SY, SZ), axes=(2, 3, 4))
    return y.astype(jnp.float32)


# Pure-JAX reference of the whole forward (for a correctness check).
def spectral_conv3d_ref(x, w_re, w_im, modes1, modes2, modes3):
    B, Cin, SX, SY, SZ = x.shape
    Cout = w_re.shape[2]
    w = (w_re + 1j * w_im).astype(jnp.complex64)
    x_ft = jnp.fft.rfftn(x, axes=(2, 3, 4))
    ZR = x_ft.shape[4]
    z_dim = min(ZR, modes3)

    def corner(sl1, sl2):
        c = x_ft[:, :, sl1, sl2, :z_dim]
        if modes3 - z_dim > 0:
            c = jnp.pad(c, ((0, 0), (0, 0), (0, 0), (0, 0), (0, modes3 - z_dim)))
        return c

    def mul(a, b):
        return jnp.einsum("bixyz,ioxyz->boxyz", a, b)

    out_ft = jnp.zeros((B, Cout, SX, SY, modes3), dtype=jnp.complex64)
    out_ft = out_ft.at[:, :, :modes1, :modes2, :].set(
        mul(corner(slice(0, modes1), slice(0, modes2)), w[0]))
    out_ft = out_ft.at[:, :, -modes1:, :modes2, :].set(
        mul(corner(slice(-modes1, None), slice(0, modes2)), w[1]))
    out_ft = out_ft.at[:, :, :modes1, -modes2:, :].set(
        mul(corner(slice(0, modes1), slice(-modes2, None)), w[2]))
    out_ft = out_ft.at[:, :, -modes1:, -modes2:, :].set(
        mul(corner(slice(-modes1, None), slice(-modes2, None)), w[3]))

    zr_full = SZ // 2 + 1
    if modes3 < zr_full:
        out_ft = jnp.pad(out_ft, ((0, 0), (0, 0), (0, 0), (0, 0), (0, zr_full - modes3)))
    else:
        out_ft = out_ft[..., :zr_full]
    return jnp.fft.irfftn(out_ft, s=(SX, SY, SZ), axes=(2, 3, 4)).astype(jnp.float32)


if __name__ == "__main__":
    # Small, module-consistent shapes: batch=2, in_ch=4, out_ch=4, spatial 16x16x8.
    B, Cin, Cout = 2, 4, 4
    SX, SY, SZ = 16, 16, 8
    modes1, modes2, modes3 = 4, 4, 3

    key = jax.random.PRNGKey(0)
    kx, kwr, kwi = jax.random.split(key, 3)

    x = jax.random.normal(kx, (B, Cin, SX, SY, SZ), dtype=jnp.float32)

    # Deterministic parameter init mirroring torch: scale * uniform[0,1) for re & im,
    # for each of weights1..weights4 of shape (Cin, Cout, m1, m2, m3).
    scale = 1.0 / (Cin * Cout)
    wshape = (4, Cin, Cout, modes1, modes2, modes3)
    w_re = scale * jax.random.uniform(kwr, wshape, dtype=jnp.float32)
    w_im = scale * jax.random.uniform(kwi, wshape, dtype=jnp.float32)

    # Weights are packed ONCE (hoisted out of the per-call forward).
    w_packed = jax.block_until_ready(pack_spectral_weights(w_re, w_im))

    fwd = jax.jit(spectral_conv3d, static_argnums=(2, 3, 4))
    y = jax.block_until_ready(fwd(x, w_packed, modes1, modes2, modes3))

    y_ref = spectral_conv3d_ref(x, w_re, w_im, modes1, modes2, modes3)
    assert y.shape == (B, Cout, SX, SY, SZ), y.shape
    assert jnp.allclose(y, y_ref, atol=1e-5, rtol=1e-5), float(jnp.max(jnp.abs(y - y_ref)))

    print("KERNEL_OK")
</pallas_src>

<mosaic_0001>
module attributes {stable_mosaic.version = 11 : i64} {
  func.func @_compl_mul_kernel(%arg0: i32, %arg1: i32, %arg2: i32, %arg3: memref<1x2x4x2x128xf32, #tpu.memory_space<vmem>>, %arg4: memref<1x2x4x4x128xf32, #tpu.memory_space<vmem>>, %arg5: memref<1x2x2x4x128xf32, #tpu.memory_space<vmem>>) attributes {dimension_semantics = [#tpu.dimension_semantics<parallel>, #tpu.dimension_semantics<parallel>, #tpu.dimension_semantics<parallel>], iteration_bounds = array<i64: 4, 1, 1>, scalar_prefetch = 0 : i64, scratch_operands = 0 : i64, tpu.core_type = #tpu.core_type<tc>, window_params = [{transform_indices = @transform_0, window_bounds = array<i64: 1, 2, 4, 2, 128>}, {transform_indices = @transform_1, window_bounds = array<i64: 1, 2, 4, 4, 128>}, {transform_indices = @transform_2, window_bounds = array<i64: 1, 2, 2, 4, 128>}]} {
    %cst = arith.constant 0.000000e+00 : f32
    %0 = vector.broadcast %cst : f32 to vector<2x4x128xf32>
    %cst_0 = arith.constant 0.000000e+00 : f32
    %1 = vector.broadcast %cst_0 : f32 to vector<2x4x128xf32>
    %c0_i32 = arith.constant 0 : i32
    %c0 = arith.constant 0 : index
    %c0_1 = arith.constant 0 : index
    %2 = arith.index_cast %c0_i32 : i32 to index
    %c0_2 = arith.constant 0 : index
    %c0_3 = arith.constant 0 : index
    %3 = vector.load %arg3[%c0, %c0_1, %2, %c0_2, %c0_3] : memref<1x2x4x2x128xf32, #tpu.memory_space<vmem>>, vector<1x1x1x2x128xf32>
    %4 = vector.shape_cast %3 : vector<1x1x1x2x128xf32> to vector<2x128xf32>
    %5 = vector.shape_cast %4 : vector<2x128xf32> to vector<2x1x128xf32>
    %c0_4 = arith.constant 0 : index
    %c1 = arith.constant 1 : index
    %6 = arith.index_cast %c0_i32 : i32 to index
    %c0_5 = arith.constant 0 : index
    %c0_6 = arith.constant 0 : index
    %7 = vector.load %arg3[%c0_4, %c1, %6, %c0_5, %c0_6] : memref<1x2x4x2x128xf32, #tpu.memory_space<vmem>>, vector<1x1x1x2x128xf32>
    %8 = vector.shape_cast %7 : vector<1x1x1x2x128xf32> to vector<2x128xf32>
    %9 = vector.shape_cast %8 : vector<2x128xf32> to vector<2x1x128xf32>
    %c0_7 = arith.constant 0 : index
    %c0_8 = arith.constant 0 : index
    %10 = arith.index_cast %c0_i32 : i32 to index
    %c0_9 = arith.constant 0 : index
    %c0_10 = arith.constant 0 : index
    %11 = vector.load %arg4[%c0_7, %c0_8, %10, %c0_9, %c0_10] : memref<1x2x4x4x128xf32, #tpu.memory_space<vmem>>, vector<1x1x1x4x128xf32>
    %12 = vector.shape_cast %11 : vector<1x1x1x4x128xf32> to vector<4x128xf32>
    %13 = vector.shape_cast %12 : vector<4x128xf32> to vector<1x4x128xf32>
    %c0_11 = arith.constant 0 : index
    %c1_12 = arith.constant 1 : index
    %14 = arith.index_cast %c0_i32 : i32 to index
    %c0_13 = arith.constant 0 : index
    %c0_14 = arith.constant 0 : index
    %15 = vector.load %arg4[%c0_11, %c1_12, %14, %c0_13, %c0_14] : memref<1x2x4x4x128xf32, #tpu.memory_space<vmem>>, vector<1x1x1x4x128xf32>
    %16 = vector.shape_cast %15 : vector<1x1x1x4x128xf32> to vector<4x128xf32>
    %17 = vector.shape_cast %16 : vector<4x128xf32> to vector<1x4x128xf32>
    %18 = vector.broadcast %5 : vector<2x1x128xf32> to vector<2x4x128xf32>
    %19 = vector.broadcast %13 : vector<1x4x128xf32> to vector<2x4x128xf32>
    %20 = arith.mulf %18, %19 : vector<2x4x128xf32>
    %21 = vector.broadcast %9 : vector<2x1x128xf32> to vector<2x4x128xf32>
    %22 = vector.broadcast %17 : vector<1x4x128xf32> to vector<2x4x128xf32>
    %23 = arith.mulf %21, %22 : vector<2x4x128xf32>
    %24 = arith.subf %20, %23 : vector<2x4x128xf32>
    %25 = arith.addf %0, %24 : vector<2x4x128xf32>
    %26 = vector.broadcast %5 : vector<2x1x128xf32> to vector<2x4x128xf32>
    %27 = vector.broadcast %17 : vector<1x4x128xf32> to vector<2x4x128xf32>
    %28 = arith.mulf %26, %27 : vector<2x4x128xf32>
    %29 = vector.broadcast %9 : vector<2x1x128xf32> to vector<2x4x128xf32>
    %30 = vector.broadcast %13 : vector<1x4x128xf32> to vector<2x4x128xf32>
    %31 = arith.mulf %29, %30 : vector<2x4x128xf32>
    %32 = arith.addf %28, %31 : vector<2x4x128xf32>
    %33 = arith.addf %1, %32 : vector<2x4x128xf32>
    %c1_i32 = arith.constant 1 : i32
    %c0_15 = arith.constant 0 : index
    %c0_16 = arith.constant 0 : index
    %34 = arith.index_cast %c1_i32 : i32 to index
    %c0_17 = arith.constant 0 : index
    %c0_18 = arith.constant 0 : index
    %35 = vector.load %arg3[%c0_15, %c0_16, %34, %c0_17, %c0_18] : memref<1x2x4x2x128xf32, #tpu.memory_space<vmem>>, vector<1x1x1x2x128xf32>
    %36 = vector.shape_cast %35 : vector<1x1x1x2x128xf32> to vector<2x128xf32>
    %37 = vector.shape_cast %36 : vector<2x128xf32> to vector<2x1x128xf32>
    %c0_19 = arith.constant 0 : index
    %c1_20 = arith.constant 1 : index
    %38 = arith.index_cast %c1_i32 : i32 to index
    %c0_21 = arith.constant 0 : index
    %c0_22 = arith.constant 0 : index
    %39 = vector.load %arg3[%c0_19, %c1_20, %38, %c0_21, %c0_22] : memref<1x2x4x2x128xf32, #tpu.memory_space<vmem>>, vector<1x1x1x2x128xf32>
    %40 = vector.shape_cast %39 : vector<1x1x1x2x128xf32> to vector<2x128xf32>
    %41 = vector.shape_cast %40 : vector<2x128xf32> to vector<2x1x128xf32>
    %c0_23 = arith.constant 0 : index
    %c0_24 = arith.constant 0 : index
    %42 = arith.index_cast %c1_i32 : i32 to index
    %c0_25 = arith.constant 0 : index
    %c0_26 = arith.constant 0 : index
    %43 = vector.load %arg4[%c0_23, %c0_24, %42, %c0_25, %c0_26] : memref<1x2x4x4x128xf32, #tpu.memory_space<vmem>>, vector<1x1x1x4x128xf32>
    %44 = vector.shape_cast %43 : vector<1x1x1x4x128xf32> to vector<4x128xf32>
    %45 = vector.shape_cast %44 : vector<4x128xf32> to vector<1x4x128xf32>
    %c0_27 = arith.constant 0 : index
    %c1_28 = arith.constant 1 : index
    %46 = arith.index_cast %c1_i32 : i32 to index
    %c0_29 = arith.constant 0 : index
    %c0_30 = arith.constant 0 : index
    %47 = vector.load %arg4[%c0_27, %c1_28, %46, %c0_29, %c0_30] : memref<1x2x4x4x128xf32, #tpu.memory_space<vmem>>, vector<1x1x1x4x128xf32>
    %48 = vector.shape_cast %47 : vector<1x1x1x4x128xf32> to vector<4x128xf32>
    %49 = vector.shape_cast %48 : vector<4x128xf32> to vector<1x4x128xf32>
    %50 = vector.broadcast %37 : vector<2x1x128xf32> to vector<2x4x128xf32>
    %51 = vector.broadcast %45 : vector<1x4x128xf32> to vector<2x4x128xf32>
    %52 = arith.mulf %50, %51 : vector<2x4x128xf32>
    %53 = vector.broadcast %41 : vector<2x1x128xf32> to vector<2x4x128xf32>
    %54 = vector.broadcast %49 : vector<1x4x128xf32> to vector<2x4x128xf32>
    %55 = arith.mulf %53, %54 : vector<2x4x128xf32>
    %56 = arith.subf %52, %55 : vector<2x4x128xf32>
    %57 = arith.addf %25, %56 : vector<2x4x128xf32>
    %58 = vector.broadcast %37 : vector<2x1x128xf32> to vector<2x4x128xf32>
    %59 = vector.broadcast %49 : vector<1x4x128xf32> to vector<2x4x128xf32>
    %60 = arith.mulf %58, %59 : vector<2x4x128xf32>
    %61 = vector.broadcast %41 : vector<2x1x128xf32> to vector<2x4x128xf32>
    %62 = vector.broadcast %45 : vector<1x4x128xf32> to vector<2x4x128xf32>
    %63 = arith.mulf %61, %62 : vector<2x4x128xf32>
    %64 = arith.addf %60, %63 : vector<2x4x128xf32>
    %65 = arith.addf %33, %64 : vector<2x4x128xf32>
    %c2_i32 = arith.constant 2 : i32
    %c0_31 = arith.constant 0 : index
    %c0_32 = arith.constant 0 : index
    %66 = arith.index_cast %c2_i32 : i32 to index
    %c0_33 = arith.constant 0 : index
    %c0_34 = arith.constant 0 : index
    %67 = vector.load %arg3[%c0_31, %c0_32, %66, %c0_33, %c0_34] : memref<1x2x4x2x128xf32, #tpu.memory_space<vmem>>, vector<1x1x1x2x128xf32>
    %68 = vector.shape_cast %67 : vector<1x1x1x2x128xf32> to vector<2x128xf32>
    %69 = vector.shape_cast %68 : vector<2x128xf32> to vector<2x1x128xf32>
    %c0_35 = arith.constant 0 : index
    %c1_36 = arith.constant 1 : index
    %70 = arith.index_cast %c2_i32 : i32 to index
    %c0_37 = arith.constant 0 : index
    %c0_38 = arith.constant 0 : index
    %71 = vector.load %arg3[%c0_35, %c1_36, %70, %c0_37, %c0_38] : memref<1x2x4x2x128xf32, #tpu.memory_space<vmem>>, vector<1x1x1x2x128xf32>
    %72 = vector.shape_cast %71 : vector<1x1x1x2x128xf32> to vector<2x128xf32>
    %73 = vector.shape_cast %72 : vector<2x128xf32> to vector<2x1x128xf32>
    %c0_39 = arith.constant 0 : index
    %c0_40 = arith.constant 0 : index
    %74 = arith.index_cast %c2_i32 : i32 to index
    %c0_41 = arith.constant 0 : index
    %c0_42 = arith.constant 0 : index
    %75 = vector.load %arg4[%c0_39, %c0_40, %74, %c0_41, %c0_42] : memref<1x2x4x4x128xf32, #tpu.memory_space<vmem>>, vector<1x1x1x4x128xf32>
    %76 = vector.shape_cast %75 : vector<1x1x1x4x128xf32> to vector<4x128xf32>
    %77 = vector.shape_cast %76 : vector<4x128xf32> to vector<1x4x128xf32>
    %c0_43 = arith.constant 0 : index
    %c1_44 = arith.constant 1 : index
    %78 = arith.index_cast %c2_i32 : i32 to index
    %c0_45 = arith.constant 0 : index
    %c0_46 = arith.constant 0 : index
    %79 = vector.load %arg4[%c0_43, %c1_44, %78, %c0_45, %c0_46] : memref<1x2x4x4x128xf32, #tpu.memory_space<vmem>>, vector<1x1x1x4x128xf32>
    %80 = vector.shape_cast %79 : vector<1x1x1x4x128xf32> to vector<4x128xf32>
    %81 = vector.shape_cast %80 : vector<4x128xf32> to vector<1x4x128xf32>
    %82 = vector.broadcast %69 : vector<2x1x128xf32> to vector<2x4x128xf32>
    %83 = vector.broadcast %77 : vector<1x4x128xf32> to vector<2x4x128xf32>
    %84 = arith.mulf %82, %83 : vector<2x4x128xf32>
    %85 = vector.broadcast %73 : vector<2x1x128xf32> to vector<2x4x128xf32>
    %86 = vector.broadcast %81 : vector<1x4x128xf32> to vector<2x4x128xf32>
    %87 = arith.mulf %85, %86 : vector<2x4x128xf32>
    %88 = arith.subf %84, %87 : vector<2x4x128xf32>
    %89 = arith.addf %57, %88 : vector<2x4x128xf32>
    %90 = vector.broadcast %69 : vector<2x1x128xf32> to vector<2x4x128xf32>
    %91 = vector.broadcast %81 : vector<1x4x128xf32> to vector<2x4x128xf32>
    %92 = arith.mulf %90, %91 : vector<2x4x128xf32>
    %93 = vector.broadcast %73 : vector<2x1x128xf32> to vector<2x4x128xf32>
    %94 = vector.broadcast %77 : vector<1x4x128xf32> to vector<2x4x128xf32>
    %95 = arith.mulf %93, %94 : vector<2x4x128xf32>
    %96 = arith.addf %92, %95 : vector<2x4x128xf32>
    %97 = arith.addf %65, %96 : vector<2x4x128xf32>
    %c3_i32 = arith.constant 3 : i32
    %c0_47 = arith.constant 0 : index
    %c0_48 = arith.constant 0 : index
    %98 = arith.index_cast %c3_i32 : i32 to index
    %c0_49 = arith.constant 0 : index
    %c0_50 = arith.constant 0 : index
    %99 = vector.load %arg3[%c0_47, %c0_48, %98, %c0_49, %c0_50] : memref<1x2x4x2x128xf32, #tpu.memory_space<vmem>>, vector<1x1x1x2x128xf32>
    %100 = vector.shape_cast %99 : vector<1x1x1x2x128xf32> to vector<2x128xf32>
    %101 = vector.shape_cast %100 : vector<2x128xf32> to vector<2x1x128xf32>
    %c0_51 = arith.constant 0 : index
    %c1_52 = arith.constant 1 : index
    %102 = arith.index_cast %c3_i32 : i32 to index
    %c0_53 = arith.constant 0 : index
    %c0_54 = arith.constant 0 : index
    %103 = vector.load %arg3[%c0_51, %c1_52, %102, %c0_53, %c0_54] : memref<1x2x4x2x128xf32, #tpu.memory_space<vmem>>, vector<1x1x1x2x128xf32>
    %104 = vector.shape_cast %103 : vector<1x1x1x2x128xf32> to vector<2x128xf32>
    %105 = vector.shape_cast %104 : vector<2x128xf32> to vector<2x1x128xf32>
    %c0_55 = arith.constant 0 : index
    %c0_56 = arith.constant 0 : index
    %106 = arith.index_cast %c3_i32 : i32 to index
    %c0_57 = arith.constant 0 : index
    %c0_58 = arith.constant 0 : index
    %107 = vector.load %arg4[%c0_55, %c0_56, %106, %c0_57, %c0_58] : memref<1x2x4x4x128xf32, #tpu.memory_space<vmem>>, vector<1x1x1x4x128xf32>
    %108 = vector.shape_cast %107 : vector<1x1x1x4x128xf32> to vector<4x128xf32>
    %109 = vector.shape_cast %108 : vector<4x128xf32> to vector<1x4x128xf32>
    %c0_59 = arith.constant 0 : index
    %c1_60 = arith.constant 1 : index
    %110 = arith.index_cast %c3_i32 : i32 to index
    %c0_61 = arith.constant 0 : index
    %c0_62 = arith.constant 0 : index
    %111 = vector.load %arg4[%c0_59, %c1_60, %110, %c0_61, %c0_62] : memref<1x2x4x4x128xf32, #tpu.memory_space<vmem>>, vector<1x1x1x4x128xf32>
    %112 = vector.shape_cast %111 : vector<1x1x1x4x128xf32> to vector<4x128xf32>
    %113 = vector.shape_cast %112 : vector<4x128xf32> to vector<1x4x128xf32>
    %114 = vector.broadcast %101 : vector<2x1x128xf32> to vector<2x4x128xf32>
    %115 = vector.broadcast %109 : vector<1x4x128xf32> to vector<2x4x128xf32>
    %116 = arith.mulf %114, %115 : vector<2x4x128xf32>
    %117 = vector.broadcast %105 : vector<2x1x128xf32> to vector<2x4x128xf32>
    %118 = vector.broadcast %113 : vector<1x4x128xf32> to vector<2x4x128xf32>
    %119 = arith.mulf %117, %118 : vector<2x4x128xf32>
    %120 = arith.subf %116, %119 : vector<2x4x128xf32>
    %121 = arith.addf %89, %120 : vector<2x4x128xf32>
    %122 = vector.broadcast %101 : vector<2x1x128xf32> to vector<2x4x128xf32>
    %123 = vector.broadcast %113 : vector<1x4x128xf32> to vector<2x4x128xf32>
    %124 = arith.mulf %122, %123 : vector<2x4x128xf32>
    %125 = vector.broadcast %105 : vector<2x1x128xf32> to vector<2x4x128xf32>
    %126 = vector.broadcast %109 : vector<1x4x128xf32> to vector<2x4x128xf32>
    %127 = arith.mulf %125, %126 : vector<2x4x128xf32>
    %128 = arith.addf %124, %127 : vector<2x4x128xf32>
    %129 = arith.addf %97, %128 : vector<2x4x128xf32>
    %c4_i32 = arith.constant 4 : i32
    %c0_63 = arith.constant 0 : index
    %c0_64 = arith.constant 0 : index
    %c0_65 = arith.constant 0 : index
    %c0_66 = arith.constant 0 : index
    %c0_67 = arith.constant 0 : index
    %130 = vector.load %arg5[%c0_63, %c0_64, %c0_65, %c0_66, %c0_67] : memref<1x2x2x4x128xf32, #tpu.memory_space<vmem>>, vector<1x1x2x4x128xf32>
    %131 = vector.shape_cast %130 : vector<1x1x2x4x128xf32> to vector<2x4x128xf32>
    %132 = vector.shape_cast %121 : vector<2x4x128xf32> to vector<1x1x2x4x128xf32>
    tpu.vector_store %arg5[%c0_63, %c0_64, %c0_65, %c0_66, %c0_67], %132 {strides = array<i32>} : memref<1x2x2x4x128xf32, #tpu.memory_space<vmem>>, vector<1x1x2x4x128xf32>,
    %c0_68 = arith.constant 0 : index
    %c1_69 = arith.constant 1 : index
    %c0_70 = arith.constant 0 : index
    %c0_71 = arith.constant 0 : index
    %c0_72 = arith.constant 0 : index
    %133 = vector.load %arg5[%c0_68, %c1_69, %c0_70, %c0_71, %c0_72] : memref<1x2x2x4x128xf32, #tpu.memory_space<vmem>>, vector<1x1x2x4x128xf32>
    %134 = vector.shape_cast %133 : vector<1x1x2x4x128xf32> to vector<2x4x128xf32>
    %135 = vector.shape_cast %129 : vector<2x4x128xf32> to vector<1x1x2x4x128xf32>
    tpu.vector_store %arg5[%c0_68, %c1_69, %c0_70, %c0_71, %c0_72], %135 {strides = array<i32>} : memref<1x2x2x4x128xf32, #tpu.memory_space<vmem>>, vector<1x1x2x4x128xf32>,
    return
  }
  func.func @transform_0(%arg0: i32, %arg1: i32, %arg2: i32) -> (i32, i32, i32, i32, i32) {
    %c0_i32 = arith.constant 0 : i32
    %c0_i32_0 = arith.constant 0 : i32
    %c0_i32_1 = arith.constant 0 : i32
    %c0_i32_2 = arith.constant 0 : i32
    return %arg0, %c0_i32, %c0_i32_0, %c0_i32_1, %arg1 : i32, i32, i32, i32, i32
  }
  func.func @transform_1(%arg0: i32, %arg1: i32, %arg2: i32) -> (i32, i32, i32, i32, i32) {
    %c0_i32 = arith.constant 0 : i32
    %c0_i32_0 = arith.constant 0 : i32
    %c0_i32_1 = arith.constant 0 : i32
    return %arg0, %c0_i32, %c0_i32_0, %arg2, %arg1 : i32, i32, i32, i32, i32
  }
  func.func @transform_2(%arg0: i32, %arg1: i32, %arg2: i32) -> (i32, i32, i32, i32, i32) {
    %c0_i32 = arith.constant 0 : i32
    %c0_i32_0 = arith.constant 0 : i32
    %c0_i32_1 = arith.constant 0 : i32
    return %arg0, %c0_i32, %c0_i32_0, %arg2, %arg1 : i32, i32, i32, i32, i32
  }
}

</mosaic_0001>

<llo_original>
// kernel: spectral_conv3d.1
$region0: #{spectral_conv3d.1}
  #allocation0 [shape = 'u32[]', space=smem, size = 0x4, offset = 0x4, fixed_abs, tag = 'smem constant byte address 0x4 - core index']
  #allocation1 [shape = 'u32[144,128]{1,0:T(1,128)}', space=vmem, size = 0x12000, scoped, tag = 'internal scratch']
  %s0 = inlined_call_operand.vmem [shape: f32[4,2,4,2,128], index: 0, kind: input, shape index: {}]
  %s1 = inlined_call_operand.vmem [shape: f32[4,2,4,4,128], index: 1, kind: input, shape index: {}]
  %s2 = inlined_call_operand.vmem [shape: f32[4,2,2,4,128], index: 2, kind: output, shape index: {}]
  %s3 = sld [smem:[#allocation0]]
  $region41: #{spectral_conv3d.1} parent=0
    _
  %s5 = ssub.s32 1, %s3
  %s6 = scalar_select 0, %s5, %s3
  loop: start=0, step=1, limit=6
  $region2: #{spectral_conv3d.1} parent=0 // loop_pre_header
    _
  $region3: #{spectral_conv3d.1} parent=0 // loop_header
    %s8 = sphi 0, %s12
    %p9 = scmp.ge.s32.totalorder %s8, 6
    %s15 = sphi 0, %s34
    %s16 = sphi 0, %s30
    %s17 = sphi 0, %s26
    %s18 = sphi 0, %s15
    %s19 = sphi 0, %s16
    %s20 = sphi 0, %s17
    %s21 = sphi 0, %s18
    %s22 = sphi 0, %s19
    %s23 = sphi 0, %s20
    %s39 = sphi 0, %s41
    %s42 = sphi 0, %s39
    %s43 = sphi 0, %s42
    %s59 = sphi 0, %s43
    %s69 = sphi 0, %s71
    %s72 = sphi 0, %s69
    %s73 = sphi 0, %s72
    %s89 = sphi 0, %s73
    %s99 = sphi 0, %s101
    %s102 = sphi 0, %s99
    %s103 = sphi 0, %s102
    %s119 = sphi 0, %s103
  $region4: #{spectral_conv3d.1} parent=0 // loop_header_branch
    %11 = sbr.rel (%p9) target = $region8
  $region5: #{spectral_conv3d.1} parent=0 // loop_body
    %s13 = ssub.s32 %s8, 1
    %s14 = ssub.s32 %s8, 2
    %s24 = sadd.s32 1, %s17
    %p25 = scmp.ge.s32.totalorder %s24, 1
    %s26 = scalar_select %p25, 0, %s24
    %s27 = sadd.s32 1, %s16
    %s28 = scalar_select %p25, %s27, %s16
    %p29 = scmp.ge.s32.totalorder %s28, 1
    %s30 = scalar_select %p29, 0, %s28
    %s31 = sadd.s32 1, %s15
    %s32 = scalar_select %p29, %s31, %s15
    %p33 = scmp.ge.s32.totalorder %s32, 4
    %s34 = scalar_select %p33, 0, %s32
    %s35 = ssub.s32 %s15, %s34
    %s36 = ssub.s32 %s16, %s30
    %s37 = sor.u32 %s35, %s36
    %p38 = scmp.eq.s32.totalorder %s37, 0
    %s40 = sadd.s32 %s39, 1
    %s41 = scalar_select %p38, %s39, %s40
    %p44 = pneg %p38
    %p45 = scmp.eq.s32.totalorder %s8, 3
    %p46 = por %p44, %p45
    %p47 = scmp.ne.s32.totalorder %s39, %s42
    %p48 = scmp.eq.s32.totalorder %s8, 0
    %p49 = por %p47, %p48
    %p50 = scmp.ne.s32.totalorder %s39, %s42
    %p51 = scmp.eq.s32.totalorder %s13, 3
    %p52 = por %p50, %p51
    %p53 = scmp.ne.s32.totalorder %s42, %s43
    %p54 = scmp.eq.s32.totalorder %s13, 0
    %p55 = por %p53, %p54
    %p56 = scmp.ne.s32.totalorder %s42, %s43
    %p57 = scmp.eq.s32.totalorder %s14, 3
    %p58 = por %p56, %p57
    %p60 = scmp.ne.s32.totalorder %s43, %s59
    %p61 = scmp.eq.s32.totalorder %s14, 0
    %p62 = por %p60, %p61
    %s63 = ssub.s32 %s15, %s34
    %s64 = ssub.s32 %s17, %s26
    %s65 = sor.u32 %s63, %s64
    %s66 = ssub.s32 %s16, %s30
    %s67 = sor.u32 %s65, %s66
    %p68 = scmp.eq.s32.totalorder %s67, 0
    %s70 = sadd.s32 %s69, 1
    %s71 = scalar_select %p68, %s69, %s70
    %p74 = pneg %p68
    %p75 = scmp.eq.s32.totalorder %s8, 3
    %p76 = por %p74, %p75
    %p77 = scmp.ne.s32.totalorder %s69, %s72
    %p78 = scmp.eq.s32.totalorder %s8, 0
    %p79 = por %p77, %p78
    %p80 = scmp.ne.s32.totalorder %s69, %s72
    %p81 = scmp.eq.s32.totalorder %s13, 3
    %p82 = por %p80, %p81
    %p83 = scmp.ne.s32.totalorder %s72, %s73
    %p84 = scmp.eq.s32.totalorder %s13, 0
    %p85 = por %p83, %p84
    %p86 = scmp.ne.s32.totalorder %s72, %s73
    %p87 = scmp.eq.s32.totalorder %s14, 3
    %p88 = por %p86, %p87
    %p90 = scmp.ne.s32.totalorder %s73, %s89
    %p91 = scmp.eq.s32.totalorder %s14, 0
    %p92 = por %p90, %p91
    %s93 = ssub.s32 %s15, %s34
    %s94 = ssub.s32 %s17, %s26
    %s95 = sor.u32 %s93, %s94
    %s96 = ssub.s32 %s16, %s30
    %s97 = sor.u32 %s95, %s96
    %p98 = scmp.eq.s32.totalorder %s97, 0
    %s100 = sadd.s32 %s99, 1
    %s101 = scalar_select %p98, %s99, %s100
    %p104 = pneg %p98
    %p105 = scmp.eq.s32.totalorder %s8, 3
    %p106 = por %p104, %p105
    %p107 = scmp.ne.s32.totalorder %s99, %s102
    %p108 = scmp.eq.s32.totalorder %s8, 0
    %p109 = por %p107, %p108
    %p110 = scmp.ne.s32.totalorder %s99, %s102
    %p111 = scmp.eq.s32.totalorder %s13, 3
    %p112 = por %p110, %p111
    %p113 = scmp.ne.s32.totalorder %s102, %s103
    %p114 = scmp.eq.s32.totalorder %s13, 0
    %p115 = por %p113, %p114
    %p116 = scmp.ne.s32.totalorder %s102, %s103
    %p117 = scmp.eq.s32.totalorder %s14, 3
    %p118 = por %p116, %p117
    %p120 = scmp.ne.s32.totalorder %s103, %s119
    %p121 = scmp.eq.s32.totalorder %s14, 0
    %p122 = por %p120, %p121
    %p123 = scmp.le.s32.totalorder 1, %s8
    %p124 = scmp.lt.s32.totalorder %s8, 5
    %p125 = pnand %p123, %p124
    %p126 = pneg %p125
    // Predicated region
    $region9: #{spectral_conv3d.1} parent=5 // pred_check
      _
    $region10: #{spectral_conv3d.1} parent=5 // pred_check_branch
      %128 = sbr.rel (%p125) target = $region12
    $region11: #{spectral_conv3d.1} parent=5 // pred_region
      %s129 = ssub.s32 %s8, 1
    $region12: #{spectral_conv3d.1} parent=5 // pred_fallthru
      _
    %p130 = scmp.lt.s32.totalorder %s8, 4
    // Predicated region
    $region13: #{spectral_conv3d.1} parent=5 // pred_check
      %p131 = pneg %p130
    $region14: #{spectral_conv3d.1} parent=5 // pred_check_branch
      %133 = sbr.rel (%p131) target = $region16
    $region15: #{spectral_conv3d.1} parent=5 // pred_region
      // Predicated region
      $region17: #{spectral_conv3d.1} parent=15 // pred_check
        %p134 = pneg %p49
      $region18: #{spectral_conv3d.1} parent=15 // pred_check_branch
        %136 = sbr.rel (%p134) target = $region20
      $region19: #{spectral_conv3d.1} parent=15 // pred_region
        %p137 = scmp.lt.s32.totalorder %s15, 3
        %s138 = scalar_select %p137, %s15, 3
        %p139 = scmp.lt.s32.totalorder %s16, 0
        %s140 = scalar_select %p139, %s16, 0
        %s141 = smul.addr %s138, 8
        %s142 = sadd.s32 %s140, %s141
        %s143 = smul.addr %s142, 2
        %s144 = scalar_lea.vmem %s0, %s143
      $region20: #{spectral_conv3d.1} parent=15 // pred_fallthru
        _
      // Predicated region
      $region21: #{spectral_conv3d.1} parent=15 // pred_check
        %p145 = pneg %p79
      $region22: #{spectral_conv3d.1} parent=15 // pred_check_branch
        %147 = sbr.rel (%p145) target = $region24
      $region23: #{spectral_conv3d.1} parent=15 // pred_region
        %p148 = scmp.lt.s32.totalorder %s15, 3
        %s149 = scalar_select %p148, %s15, 3
        %p150 = scmp.lt.s32.totalorder %s17, 0
        %s151 = scalar_select %p150, %s17, 0
        %p152 = scmp.lt.s32.totalorder %s16, 0
        %s153 = scalar_select %p152, %s16, 0
        %s154 = sadd.s32 %s153, %s151
        %s155 = smul.addr %s149, 8
        %s156 = sadd.s32 %s154, %s155
        %s157 = smul.addr %s156, 4
        %s158 = scalar_lea.vmem %s1, %s157
      $region24: #{spectral_conv3d.1} parent=15 // pred_fallthru
        _
    $region16: #{spectral_conv3d.1} parent=5 // pred_fallthru
      _
    %p159 = scmp.le.s32.totalorder 1, %s8
    %p160 = scmp.lt.s32.totalorder %s8, 5
    %p161 = pnand %p159, %p160
    %p162 = pneg %p161
    // Predicated region
    $region25: #{spectral_conv3d.1} parent=5 // pred_check
      _
    $region26: #{spectral_conv3d.1} parent=5 // pred_check_branch
      %164 = sbr.rel (%p161) target = $region28
    $region27: #{spectral_conv3d.1} parent=5 // pred_region
      %s165 = ssub.s32 %s8, 1
      %p166 = scmp.lt.s32.totalorder %s18, 3
      %s167 = scalar_select %p166, %s18, 3
      %p168 = scmp.lt.s32.totalorder %s19, 0
      %s169 = scalar_select %p168, %s19, 0
      %s170 = smul.addr %s167, 8
      %s171 = sadd.s32 %s169, %s170
      %s172 = smul.addr %s171, 2
      %s173 = scalar_lea.vmem %s0, %s172
      %p174 = pneg %p55
      %p175 = pneg %p52
      %p176 = scmp.lt.s32.totalorder %s18, 3
      %s177 = scalar_select %p176, %s18, 3
      %p178 = scmp.lt.s32.totalorder %s20, 0
      %s179 = scalar_select %p178, %s20, 0
      %p180 = scmp.lt.s32.totalorder %s19, 0
      %s181 = scalar_select %p180, %s19, 0
      %s182 = sadd.s32 %s181, %s179
      %s183 = smul.addr %s177, 8
      %s184 = sadd.s32 %s182, %s183
      %s185 = smul.addr %s184, 4
      %s186 = scalar_lea.vmem %s1, %s185
      %p187 = pneg %p85
      %p188 = pneg %p82
      %p189 = pneg %p115
      %p190 = pneg %p112
      %p191 = scmp.lt.s32.totalorder %s18, 3
      %s192 = scalar_select %p191, %s18, 3
      %p193 = scmp.lt.s32.totalorder %s20, 0
      %s194 = scalar_select %p193, %s20, 0
      %p195 = scmp.lt.s32.totalorder %s19, 0
      %s196 = scalar_select %p195, %s19, 0
      %s197 = sadd.s32 %s196, %s194
      %s198 = smul.addr %s192, 4
      %s199 = sadd.s32 %s197, %s198
      %s200 = smul.addr %s199, 4
      %s201 = scalar_lea.vmem %s2, %s200
      %p202 = scmp.lt.s32.totalorder %s18, 3
      %s203 = scalar_select %p202, %s18, 3
      %p204 = scmp.lt.s32.totalorder %s19, 0
      %s205 = scalar_select %p204, %s19, 0
      %s206 = smul.addr %s203, 8
      %s207 = sadd.s32 %s205, %s206
      %s208 = smul.addr %s207, 2
      %s209 = scalar_lea.vmem %s0, %s208
      %p210 = scmp.lt.s32.totalorder %s18, 3
      %s211 = scalar_select %p210, %s18, 3
      %p212 = scmp.lt.s32.totalorder %s20, 0
      %s213 = scalar_select %p212, %s20, 0
      %p214 = scmp.lt.s32.totalorder %s19, 0
      %s215 = scalar_select %p214, %s19, 0
      %s216 = sadd.s32 %s215, %s213
      %s217 = smul.addr %s211, 8
      %s218 = sadd.s32 %s216, %s217
      %s219 = smul.addr %s218, 4
      %s220 = scalar_lea.vmem %s1, %s219
      %p221 = scmp.lt.s32.totalorder %s18, 3
      %s222 = scalar_select %p221, %s18, 3
      %p223 = scmp.lt.s32.totalorder %s20, 0
      %s224 = scalar_select %p223, %s20, 0
      %p225 = scmp.lt.s32.totalorder %s19, 0
      %s226 = scalar_select %p225, %s19, 0
      %s227 = sadd.s32 %s226, %s224
      %s228 = smul.addr %s222, 4
      %s229 = sadd.s32 %s227, %s228
      %s230 = smul.addr %s229, 4
      %s231 = scalar_lea.vmem %s2, %s230
      %v232 = vld [vmem:[%s209] sm:$0x3]
      %v235 = vunpack.c.l.s4 1966171168
      %v236 = vunpack.c.0.s8 %v235
      %v237 = vlaneseq
      %v238 = vshrl.u32 %v237, 7
      %v239 = vsub.s32 %v236, %v238
      %v240 = vrot.slane %v232, %v239
      %v241 = vcombine.high %v240, %v240
      %v243 = vunpack.c.l.s4 1966171168
      %v244 = vunpack.c.0.s8 %v243
      %v245 = vlaneseq
      %v246 = vshrl.u32 %v245, 7
      %v247 = vsub.s32 %v244, %v246
      %v248 = vrot.slane %v240, %v247
      %v250 = vunpack.c.l.s4 1966171168
      %v251 = vunpack.c.0.s8 %v250
      %v252 = vlaneseq
      %v253 = vshrl.u32 %v252, 7
      %v254 = vsub.s32 %v251, %v253
      %v255 = vrot.slane %v241, %v254
      %s256 = scalar_lea.vmem %s209, 8
      %v257 = vld [vmem:[%s256] sm:$0x3]
      %v260 = vunpack.c.l.s4 1966171168
      %v261 = vunpack.c.0.s8 %v260
      %v262 = vlaneseq
      %v263 = vshrl.u32 %v262, 7
      %v264 = vsub.s32 %v261, %v263
      %v265 = vrot.slane %v257, %v264
      %v266 = vcombine.high %v265, %v265
      %v268 = vunpack.c.l.s4 1966171168
      %v269 = vunpack.c.0.s8 %v268
      %v270 = vlaneseq
      %v271 = vshrl.u32 %v270, 7
      %v272 = vsub.s32 %v269, %v271
      %v273 = vrot.slane %v265, %v272
      %v275 = vunpack.c.l.s4 1966171168
      %v276 = vunpack.c.0.s8 %v275
      %v277 = vlaneseq
      %v278 = vshrl.u32 %v277, 7
      %v279 = vsub.s32 %v276, %v278
      %v280 = vrot.slane %v266, %v279
      %v281 = vld [vmem:[%s220] sm:$0xf]
      %s282 = scalar_lea.vmem %s220, 16
      %v283 = vld [vmem:[%s282] sm:$0xf]
      %v284 = vlaneseq
      %v285 = vshrl.u32 %v284, 7
      %v286 = vsub.s32 0, %v285
      %v287 = vrot.slane %v248, %v286
      %v288 = vlaneseq
      %v289 = vshrl.u32 %v288, 7
      %v290 = vsub.s32 0, %v289
      %v291 = vrot.slane %v255, %v290
      %v294 = vmul.f32 %v287, %v281
      %v295 = vmul.f32 %v291, %v281
      %v296 = vlaneseq
      %v297 = vshrl.u32 %v296, 7
      %v298 = vsub.s32 0, %v297
      %v299 = vrot.slane %v273, %v298
      %v300 = vlaneseq
      %v301 = vshrl.u32 %v300, 7
      %v302 = vsub.s32 0, %v301
      %v303 = vrot.slane %v280, %v302
      %v306 = vmul.f32 %v299, %v283
      %v307 = vmul.f32 %v303, %v283
      %v308 = vsub.f32 %v294, %v306
      %v309 = vsub.f32 %v295, %v307
      %v310 = vadd.f32 %v308, 0.0
      %v311 = vadd.f32 %v309, 0.0
      %v312 = vmul.f32 %v287, %v283
      %v313 = vmul.f32 %v291, %v283
      %v314 = vmul.f32 %v299, %v281
      %v315 = vmul.f32 %v303, %v281
      %v316 = vadd.f32 %v312, %v314
      %v317 = vadd.f32 %v313, %v315
      %v318 = vadd.f32 %v316, 0.0
      %v319 = vadd.f32 %v317, 0.0
      %s320 = scalar_lea.vmem %s209, 2
      %v321 = vld [vmem:[%s320] sm:$0x3]
      %v324 = vunpack.c.l.s4 1966171168
      %v325 = vunpack.c.0.s8 %v324
      %v326 = vlaneseq
      %v327 = vshrl.u32 %v326, 7
      %v328 = vsub.s32 %v325, %v327
      %v329 = vrot.slane %v321, %v328
      %v330 = vcombine.high %v329, %v329
      %v332 = vunpack.c.l.s4 1966171168
      %v333 = vunpack.c.0.s8 %v332
      %v334 = vlaneseq
      %v335 = vshrl.u32 %v334, 7
      %v336 = vsub.s32 %v333, %v335
      %v337 = vrot.slane %v329, %v336
      %v339 = vunpack.c.l.s4 1966171168
      %v340 = vunpack.c.0.s8 %v339
      %v341 = vlaneseq
      %v342 = vshrl.u32 %v341, 7
      %v343 = vsub.s32 %v340, %v342
      %v344 = vrot.slane %v330, %v343
      %s345 = scalar_lea.vmem %s209, 10
      %v346 = vld [vmem:[%s345] sm:$0x3]
      %v349 = vunpack.c.l.s4 1966171168
      %v350 = vunpack.c.0.s8 %v349
      %v351 = vlaneseq
      %v352 = vshrl.u32 %v351, 7
      %v353 = vsub.s32 %v350, %v352
      %v354 = vrot.slane %v346, %v353
      %v355 = vcombine.high %v354, %v354
      %v357 = vunpack.c.l.s4 1966171168
      %v358 = vunpack.c.0.s8 %v357
      %v359 = vlaneseq
      %v360 = vshrl.u32 %v359, 7
      %v361 = vsub.s32 %v358, %v360
      %v362 = vrot.slane %v354, %v361
      %v364 = vunpack.c.l.s4 1966171168
      %v365 = vunpack.c.0.s8 %v364
      %v366 = vlaneseq
      %v367 = vshrl.u32 %v366, 7
      %v368 = vsub.s32 %v365, %v367
      %v369 = vrot.slane %v355, %v368
      %s370 = scalar_lea.vmem %s220, 4
      %v371 = vld [vmem:[%s370] sm:$0xf]
      %s372 = scalar_lea.vmem %s220, 20
      %v373 = vld [vmem:[%s372] sm:$0xf]
      %v374 = vlaneseq
      %v375 = vshrl.u32 %v374, 7
      %v376 = vsub.s32 0, %v375
      %v377 = vrot.slane %v337, %v376
      %v378 = vlaneseq
      %v379 = vshrl.u32 %v378, 7
      %v380 = vsub.s32 0, %v379
      %v381 = vrot.slane %v344, %v380
      %v384 = vmul.f32 %v377, %v371
      %v385 = vmul.f32 %v381, %v371
      %v386 = vlaneseq
      %v387 = vshrl.u32 %v386, 7
      %v388 = vsub.s32 0, %v387
      %v389 = vrot.slane %v362, %v388
      %v390 = vlaneseq
      %v391 = vshrl.u32 %v390, 7
      %v392 = vsub.s32 0, %v391
      %v393 = vrot.slane %v369, %v392
      %v396 = vmul.f32 %v389, %v373
      %v397 = vmul.f32 %v393, %v373
      %v398 = vsub.f32 %v384, %v396
      %v399 = vsub.f32 %v385, %v397
      %v400 = vadd.f32 %v310, %v398
      %v401 = vadd.f32 %v311, %v399
      %v402 = vmul.f32 %v377, %v373
      %v403 = vmul.f32 %v381, %v373
      %v404 = vmul.f32 %v389, %v371
      %v405 = vmul.f32 %v393, %v371
      %v406 = vadd.f32 %v402, %v404
      %v407 = vadd.f32 %v403, %v405
      %v408 = vadd.f32 %v318, %v406
      %v409 = vadd.f32 %v319, %v407
      %s410 = scalar_lea.vmem %s209, 4
      %v411 = vld [vmem:[%s410] sm:$0x3]
      %v414 = vunpack.c.l.s4 1966171168
      %v415 = vunpack.c.0.s8 %v414
      %v416 = vlaneseq
      %v417 = vshrl.u32 %v416, 7
      %v418 = vsub.s32 %v415, %v417
      %v419 = vrot.slane %v411, %v418
      %v420 = vcombine.high %v419, %v419
      %v422 = vunpack.c.l.s4 1966171168
      %v423 = vunpack.c.0.s8 %v422
      %v424 = vlaneseq
      %v425 = vshrl.u32 %v424, 7
      %v426 = vsub.s32 %v423, %v425
      %v427 = vrot.slane %v419, %v426
      %v429 = vunpack.c.l.s4 1966171168
      %v430 = vunpack.c.0.s8 %v429
      %v431 = vlaneseq
      %v432 = vshrl.u32 %v431, 7
      %v433 = vsub.s32 %v430, %v432
      %v434 = vrot.slane %v420, %v433
      %s435 = scalar_lea.vmem %s209, 12
      %v436 = vld [vmem:[%s435] sm:$0x3]
      %v439 = vunpack.c.l.s4 1966171168
      %v440 = vunpack.c.0.s8 %v439
      %v441 = vlaneseq
      %v442 = vshrl.u32 %v441, 7
      %v443 = vsub.s32 %v440, %v442
      %v444 = vrot.slane %v436, %v443
      %v445 = vcombine.high %v444, %v444
      %v447 = vunpack.c.l.s4 1966171168
      %v448 = vunpack.c.0.s8 %v447
      %v449 = vlaneseq
      %v450 = vshrl.u32 %v449, 7
      %v451 = vsub.s32 %v448, %v450
      %v452 = vrot.slane %v444, %v451
      %v454 = vunpack.c.l.s4 1966171168
      %v455 = vunpack.c.0.s8 %v454
      %v456 = vlaneseq
      %v457 = vshrl.u32 %v456, 7
      %v458 = vsub.s32 %v455, %v457
      %v459 = vrot.slane %v445, %v458
      %s460 = scalar_lea.vmem %s220, 8
      %v461 = vld [vmem:[%s460] sm:$0xf]
      %s462 = scalar_lea.vmem %s220, 24
      %v463 = vld [vmem:[%s462] sm:$0xf]
      %v464 = vlaneseq
      %v465 = vshrl.u32 %v464, 7
      %v466 = vsub.s32 0, %v465
      %v467 = vrot.slane %v427, %v466
      %v468 = vlaneseq
      %v469 = vshrl.u32 %v468, 7
      %v470 = vsub.s32 0, %v469
      %v471 = vrot.slane %v434, %v470
      %v474 = vmul.f32 %v467, %v461
      %v475 = vmul.f32 %v471, %v461
      %v476 = vlaneseq
      %v477 = vshrl.u32 %v476, 7
      %v478 = vsub.s32 0, %v477
      %v479 = vrot.slane %v452, %v478
      %v480 = vlaneseq
      %v481 = vshrl.u32 %v480, 7
      %v482 = vsub.s32 0, %v481
      %v483 = vrot.slane %v459, %v482
      %v486 = vmul.f32 %v479, %v463
      %v487 = vmul.f32 %v483, %v463
      %v488 = vsub.f32 %v474, %v486
      %v489 = vsub.f32 %v475, %v487
      %v490 = vadd.f32 %v400, %v488
      %v491 = vadd.f32 %v401, %v489
      %v492 = vmul.f32 %v467, %v463
      %v493 = vmul.f32 %v471, %v463
      %v494 = vmul.f32 %v479, %v461
      %v495 = vmul.f32 %v483, %v461
      %v496 = vadd.f32 %v492, %v494
      %v497 = vadd.f32 %v493, %v495
      %v498 = vadd.f32 %v408, %v496
      %v499 = vadd.f32 %v409, %v497
      %s500 = scalar_lea.vmem %s209, 6
      %v501 = vld [vmem:[%s500] sm:$0x3]
      %v504 = vunpack.c.l.s4 1966171168
      %v505 = vunpack.c.0.s8 %v504
      %v506 = vlaneseq
      %v507 = vshrl.u32 %v506, 7
      %v508 = vsub.s32 %v505, %v507
      %v509 = vrot.slane %v501, %v508
      %v510 = vcombine.high %v509, %v509
      %v512 = vunpack.c.l.s4 1966171168
      %v513 = vunpack.c.0.s8 %v512
      %v514 = vlaneseq
      %v515 = vshrl.u32 %v514, 7
      %v516 = vsub.s32 %v513, %v515
      %v517 = vrot.slane %v509, %v516
      %v519 = vunpack.c.l.s4 1966171168
      %v520 = vunpack.c.0.s8 %v519
      %v521 = vlaneseq
      %v522 = vshrl.u32 %v521, 7
      %v523 = vsub.s32 %v520, %v522
      %v524 = vrot.slane %v510, %v523
      %s525 = scalar_lea.vmem %s209, 14
      %v526 = vld [vmem:[%s525] sm:$0x3]
      %v529 = vunpack.c.l.s4 1966171168
      %v530 = vunpack.c.0.s8 %v529
      %v531 = vlaneseq
      %v532 = vshrl.u32 %v531, 7
      %v533 = vsub.s32 %v530, %v532
      %v534 = vrot.slane %v526, %v533
      %v535 = vcombine.high %v534, %v534
      %v537 = vunpack.c.l.s4 1966171168
      %v538 = vunpack.c.0.s8 %v537
      %v539 = vlaneseq
      %v540 = vshrl.u32 %v539, 7
      %v541 = vsub.s32 %v538, %v540
      %v542 = vrot.slane %v534, %v541
      %v544 = vunpack.c.l.s4 1966171168
      %v545 = vunpack.c.0.s8 %v544
      %v546 = vlaneseq
      %v547 = vshrl.u32 %v546, 7
      %v548 = vsub.s32 %v545, %v547
      %v549 = vrot.slane %v535, %v548
      %s550 = scalar_lea.vmem %s220, 12
      %v551 = vld [vmem:[%s550] sm:$0xf]
      %s552 = scalar_lea.vmem %s220, 28
      %v553 = vld [vmem:[%s552] sm:$0xf]
      %v554 = vlaneseq
      %v555 = vshrl.u32 %v554, 7
      %v556 = vsub.s32 0, %v555
      %v557 = vrot.slane %v517, %v556
      %v558 = vlaneseq
      %v559 = vshrl.u32 %v558, 7
      %v560 = vsub.s32 0, %v559
      %v561 = vrot.slane %v524, %v560
      %v564 = vmul.f32 %v557, %v551
      %v565 = vmul.f32 %v561, %v551
      %v566 = vlaneseq
      %v567 = vshrl.u32 %v566, 7
      %v568 = vsub.s32 0, %v567
      %v569 = vrot.slane %v542, %v568
      %v570 = vlaneseq
      %v571 = vshrl.u32 %v570, 7
      %v572 = vsub.s32 0, %v571
      %v573 = vrot.slane %v549, %v572
      %v576 = vmul.f32 %v569, %v553
      %v577 = vmul.f32 %v573, %v553
      %v578 = vsub.f32 %v564, %v576
      %v579 = vsub.f32 %v565, %v577
      %v580 = vadd.f32 %v490, %v578
      %v581 = vadd.f32 %v491, %v579
      %v582 = vmul.f32 %v557, %v553
      %v583 = vmul.f32 %v561, %v553
      %v584 = vmul.f32 %v569, %v551
      %v585 = vmul.f32 %v573, %v551
      %v586 = vadd.f32 %v582, %v584
      %v587 = vadd.f32 %v583, %v585
      %v588 = vadd.f32 %v498, %v586
      %v589 = vadd.f32 %v499, %v587
      %590 = vst [vmem:[%s231] sm:$0xf] %v580
      %591 = vst [vmem:[%s231 + $0x4] sm:$0xf] %v581
      %s592 = scalar_lea.vmem %s231, 8
      %593 = vst [vmem:[%s592] sm:$0xf] %v588
      %594 = vst [vmem:[%s592 + $0x4] sm:$0xf] %v589
      %p595 = scmp.lt.s32.totalorder %s18, 3
      %s596 = scalar_select %p595, %s18, 3
      %p597 = scmp.lt.s32.totalorder %s20, 0
      %s598 = scalar_select %p597, %s20, 0
      %p599 = scmp.lt.s32.totalorder %s19, 0
      %s600 = scalar_select %p599, %s19, 0
      %s601 = sadd.s32 %s600, %s598
      %s602 = smul.addr %s596, 4
      %s603 = sadd.s32 %s601, %s602
      %s604 = smul.addr %s603, 4
      %s605 = scalar_lea.vmem %s2, %s604
      // Predicated region
      $region29: #{spectral_conv3d.1} parent=27 // pred_check
        %p606 = pneg %p112
      $region30: #{spectral_conv3d.1} parent=27 // pred_check_branch
        %608 = sbr.rel (%p606) target = $region32
      $region31: #{spectral_conv3d.1} parent=27 // pred_region
        _
      $region32: #{spectral_conv3d.1} parent=27 // pred_fallthru
        _
    $region28: #{spectral_conv3d.1} parent=5 // pred_fallthru
      _
    %p609 = scmp.le.s32.totalorder 2, %s8
    // Predicated region
    $region33: #{spectral_conv3d.1} parent=5 // pred_check
      %p610 = pneg %p609
    $region34: #{spectral_conv3d.1} parent=5 // pred_check_branch
      %612 = sbr.rel (%p610) target = $region36
    $region35: #{spectral_conv3d.1} parent=5 // pred_region
      %s613 = ssub.s32 %s8, 2
      // Predicated region
      $region37: #{spectral_conv3d.1} parent=35 // pred_check
        %p614 = pneg %p118
      $region38: #{spectral_conv3d.1} parent=35 // pred_check_branch
        %616 = sbr.rel (%p614) target = $region40
      $region39: #{spectral_conv3d.1} parent=35 // pred_region
        %p617 = scmp.lt.s32.totalorder %s21, 3
        %s618 = scalar_select %p617, %s21, 3
        %p619 = scmp.lt.s32.totalorder %s23, 0
        %s620 = scalar_select %p619, %s23, 0
        %p621 = scmp.lt.s32.totalorder %s22, 0
        %s622 = scalar_select %p621, %s22, 0
        %s623 = sadd.s32 %s622, %s620
        %s624 = smul.addr %s618, 4
        %s625 = sadd.s32 %s623, %s624
        %s626 = smul.addr %s625, 4
        %s627 = scalar_lea.vmem %s2, %s626
      $region40: #{spectral_conv3d.1} parent=35 // pred_fallthru
        _
    $region36: #{spectral_conv3d.1} parent=5 // pred_fallthru
      _
  $region6: #{spectral_conv3d.1} parent=0 // loop_footer
    %s12 = sadd.s32 1, %s8
  $region7: #{spectral_conv3d.1} parent=0 // loop_footer_branch
    %7 = sbr.rel target = $region3
  $region8: #{spectral_conv3d.1} parent=0 // loop_exit
    _

// kernel: reverse.1
$region0: #{reverse.1}
  #allocation0 [shape = 's32[1]{0}', space=sflag, size = 0x4, scoped, tag = 'scoped memory for reverse.1']
  %s0 = inlined_call_operand.vmem [shape: f32[2,4,16,16,3], index: 0, kind: input, shape index: {}]
  %s1 = inlined_call_operand.vmem [shape: f32[2,4,16,16,3], index: 1, kind: output, shape index: {}]
  %s2 = scalar_lea.vmem %s0, 32
  %v3 = vld [vmem:[%s2] sm:$0xff]
  %4 = vst [vmem:[%s1] sm:$0xff] %v3
  %s5 = scalar_lea.vmem %s0, 224
  %v6 = vld [vmem:[%s5] sm:$0xff]
  %s7 = scalar_lea.vmem %s1, 192
  %8 = vst [vmem:[%s7] sm:$0xff] %v6
  %s9 = scalar_lea.vmem %s0, 80
  %v10 = vld [vmem:[%s9] sm:$0xff]
  %s11 = scalar_lea.vmem %s1, 48
  %12 = vst [vmem:[%s11] sm:$0xff] %v10
  %s13 = scalar_lea.vmem %s0, 272
  %v14 = vld [vmem:[%s13] sm:$0xff]
  %s15 = scalar_lea.vmem %s1, 240
  %16 = vst [vmem:[%s15] sm:$0xff] %v14
  %s17 = scalar_lea.vmem %s0, 128
  %v18 = vld [vmem:[%s17] sm:$0xff]
  %s19 = scalar_lea.vmem %s1, 96
  %20 = vst [vmem:[%s19] sm:$0xff] %v18
  %s21 = scalar_lea.vmem %s0, 320
  %v22 = vld [vmem:[%s21] sm:$0xff]
  %s23 = scalar_lea.vmem %s1, 288
  %24 = vst [vmem:[%s23] sm:$0xff] %v22
  %s25 = scalar_lea.vmem %s0, 176
  %v26 = vld [vmem:[%s25] sm:$0xff]
  %s27 = scalar_lea.vmem %s1, 144
  %28 = vst [vmem:[%s27] sm:$0xff] %v26
  %s29 = scalar_lea.vmem %s0, 368
  %v30 = vld [vmem:[%s29] sm:$0xff]
  %s31 = scalar_lea.vmem %s1, 336
  %32 = vst [vmem:[%s31] sm:$0xff] %v30
  %s33 = scalar_lea.vmem %s0, 16
  %v34 = vld [vmem:[%s33] sm:$0xff]
  %s35 = scalar_lea.vmem %s1, 16
  %36 = vst [vmem:[%s35] sm:$0xff] %v34
  %s37 = scalar_lea.vmem %s0, 208
  %v38 = vld [vmem:[%s37] sm:$0xff]
  %s39 = scalar_lea.vmem %s1, 208
  %40 = vst [vmem:[%s39] sm:$0xff] %v38
  %s41 = scalar_lea.vmem %s0, 64
  %v42 = vld [vmem:[%s41] sm:$0xff]
  %s43 = scalar_lea.vmem %s1, 64
  %44 = vst [vmem:[%s43] sm:$0xff] %v42
  %s45 = scalar_lea.vmem %s0, 256
  %v46 = vld [vmem:[%s45] sm:$0xff]
  %s47 = scalar_lea.vmem %s1, 256
  %48 = vst [vmem:[%s47] sm:$0xff] %v46
  %s49 = scalar_lea.vmem %s0, 112
  %v50 = vld [vmem:[%s49] sm:$0xff]
  %s51 = scalar_lea.vmem %s1, 112
  %52 = vst [vmem:[%s51] sm:$0xff] %v50
  %s53 = scalar_lea.vmem %s0, 304
  %v54 = vld [vmem:[%s53] sm:$0xff]
  %s55 = scalar_lea.vmem %s1, 304
  %56 = vst [vmem:[%s55] sm:$0xff] %v54
  %s57 = scalar_lea.vmem %s0, 160
  %v58 = vld [vmem:[%s57] sm:$0xff]
  %s59 = scalar_lea.vmem %s1, 160
  %60 = vst [vmem:[%s59] sm:$0xff] %v58
  %s61 = scalar_lea.vmem %s0, 352
  %v62 = vld [vmem:[%s61] sm:$0xff]
  %s63 = scalar_lea.vmem %s1, 352
  %64 = vst [vmem:[%s63] sm:$0xff] %v62
  %v65 = vld [vmem:[%s0] sm:$0xff]
  %s66 = scalar_lea.vmem %s1, 32
  %67 = vst [vmem:[%s66] sm:$0xff] %v65
  %s68 = scalar_lea.vmem %s0, 192
  %v69 = vld [vmem:[%s68] sm:$0xff]
  %s70 = scalar_lea.vmem %s1, 224
  %71 = vst [vmem:[%s70] sm:$0xff] %v69
  %s72 = scalar_lea.vmem %s0, 48
  %v73 = vld [vmem:[%s72] sm:$0xff]
  %s74 = scalar_lea.vmem %s1, 80
  %75 = vst [vmem:[%s74] sm:$0xff] %v73
  %s76 = scalar_lea.vmem %s0, 240
  %v77 = vld [vmem:[%s76] sm:$0xff]
  %s78 = scalar_lea.vmem %s1, 272
  %79 = vst [vmem:[%s78] sm:$0xff] %v77
  %s80 = scalar_lea.vmem %s0, 96
  %v81 = vld [vmem:[%s80] sm:$0xff]
  %s82 = scalar_lea.vmem %s1, 128
  %83 = vst [vmem:[%s82] sm:$0xff] %v81
  %s84 = scalar_lea.vmem %s0, 288
  %v85 = vld [vmem:[%s84] sm:$0xff]
  %s86 = scalar_lea.vmem %s1, 320
  %87 = vst [vmem:[%s86] sm:$0xff] %v85
  %s88 = scalar_lea.vmem %s0, 144
  %v89 = vld [vmem:[%s88] sm:$0xff]
  %s90 = scalar_lea.vmem %s1, 176
  %91 = vst [vmem:[%s90] sm:$0xff] %v89
  %s92 = scalar_lea.vmem %s0, 336
  %v93 = vld [vmem:[%s92] sm:$0xff]
  %s94 = scalar_lea.vmem %s1, 368
  %95 = vst [vmem:[%s94] sm:$0xff] %v93
  %s96 = scalar_lea.vmem %s0, 40
  %v97 = vld [vmem:[%s96] sm:$0xff]
  %s98 = scalar_lea.vmem %s1, 8
  %99 = vst [vmem:[%s98] sm:$0xff] %v97
  %s100 = scalar_lea.vmem %s0, 232
  %v101 = vld [vmem:[%s100] sm:$0xff]
  %s102 = scalar_lea.vmem %s1, 200
  %103 = vst [vmem:[%s102] sm:$0xff] %v101
  %s104 = scalar_lea.vmem %s0, 88
  %v105 = vld [vmem:[%s104] sm:$0xff]
  %s106 = scalar_lea.vmem %s1, 56
  %107 = vst [vmem:[%s106] sm:$0xff] %v105
  %s108 = scalar_lea.vmem %s0, 280
  %v109 = vld [vmem:[%s108] sm:$0xff]
  %s110 = scalar_lea.vmem %s1, 248
  %111 = vst [vmem:[%s110] sm:$0xff] %v109
  %s112 = scalar_lea.vmem %s0, 136
  %v113 = vld [vmem:[%s112] sm:$0xff]
  %s114 = scalar_lea.vmem %s1, 104
  %115 = vst [vmem:[%s114] sm:$0xff] %v113
  %s116 = scalar_lea.vmem %s0, 328
  %v117 = vld [vmem:[%s116] sm:$0xff]
  %s118 = scalar_lea.vmem %s1, 296
  %119 = vst [vmem:[%s118] sm:$0xff] %v117
  %s120 = scalar_lea.vmem %s0, 184
  %v121 = vld [vmem:[%s120] sm:$0xff]
  %s122 = scalar_lea.vmem %s1, 152
  %123 = vst [vmem:[%s122] sm:$0xff] %v121
  %s124 = scalar_lea.vmem %s0, 376
  %v125 = vld [vmem:[%s124] sm:$0xff]
  %s126 = scalar_lea.vmem %s1, 344
  %127 = vst [vmem:[%s126] sm:$0xff] %v125
  %s128 = scalar_lea.vmem %s0, 24
  %v129 = vld [vmem:[%s128] sm:$0xff]
  %s130 = scalar_lea.vmem %s1, 24
  %131 = vst [vmem:[%s130] sm:$0xff] %v129
  %s132 = scalar_lea.vmem %s0, 216
  %v133 = vld [vmem:[%s132] sm:$0xff]
  %s134 = scalar_lea.vmem %s1, 216
  %135 = vst [vmem:[%s134] sm:$0xff] %v133
  %s136 = scalar_lea.vmem %s0, 72
  %v137 = vld [vmem:[%s136] sm:$0xff]
  %s138 = scalar_lea.vmem %s1, 72
  %139 = vst [vmem:[%s138] sm:$0xff] %v137
  %s140 = scalar_lea.vmem %s0, 264
  %v141 = vld [vmem:[%s140] sm:$0xff]
  %s142 = scalar_lea.vmem %s1, 264
  %143 = vst [vmem:[%s142] sm:$0xff] %v141
  %s144 = scalar_lea.vmem %s0, 120
  %v145 = vld [vmem:[%s144] sm:$0xff]
  %s146 = scalar_lea.vmem %s1, 120
  %147 = vst [vmem:[%s146] sm:$0xff] %v145
  %s148 = scalar_lea.vmem %s0, 312
  %v149 = vld [vmem:[%s148] sm:$0xff]
  %s150 = scalar_lea.vmem %s1, 312
  %151 = vst [vmem:[%s150] sm:$0xff] %v149
  %s152 = scalar_lea.vmem %s0, 168
  %v153 = vld [vmem:[%s152] sm:$0xff]
  %s154 = scalar_lea.vmem %s1, 168
  %155 = vst [vmem:[%s154] sm:$0xff] %v153
  %s156 = scalar_lea.vmem %s0, 360
  %v157 = vld [vmem:[%s156] sm:$0xff]
  %s158 = scalar_lea.vmem %s1, 360
  %159 = vst [vmem:[%s158] sm:$0xff] %v157
  %s160 = scalar_lea.vmem %s0, 8
  %v161 = vld [vmem:[%s160] sm:$0xff]
  %s162 = scalar_lea.vmem %s1, 40
  %163 = vst [vmem:[%s162] sm:$0xff] %v161
  %s164 = scalar_lea.vmem %s0, 200
  %v165 = vld [vmem:[%s164] sm:$0xff]
  %s166 = scalar_lea.vmem %s1, 232
  %167 = vst [vmem:[%s166] sm:$0xff] %v165
  %s168 = scalar_lea.vmem %s0, 56
  %v169 = vld [vmem:[%s168] sm:$0xff]
  %s170 = scalar_lea.vmem %s1, 88
  %171 = vst [vmem:[%s170] sm:$0xff] %v169
  %s172 = scalar_lea.vmem %s0, 248
  %v173 = vld [vmem:[%s172] sm:$0xff]
  %s174 = scalar_lea.vmem %s1, 280
  %175 = vst [vmem:[%s174] sm:$0xff] %v173
  %s176 = scalar_lea.vmem %s0, 104
  %v177 = vld [vmem:[%s176] sm:$0xff]
  %s178 = scalar_lea.vmem %s1, 136
  %179 = vst [vmem:[%s178] sm:$0xff] %v177
  %s180 = scalar_lea.vmem %s0, 296
  %v181 = vld [vmem:[%s180] sm:$0xff]
  %s182 = scalar_lea.vmem %s1, 328
  %183 = vst [vmem:[%s182] sm:$0xff] %v181
  %s184 = scalar_lea.vmem %s0, 152
  %v185 = vld [vmem:[%s184] sm:$0xff]
  %s186 = scalar_lea.vmem %s1, 184
  %187 = vst [vmem:[%s186] sm:$0xff] %v185
  %s188 = scalar_lea.vmem %s0, 344
  %v189 = vld [vmem:[%s188] sm:$0xff]
  %s190 = scalar_lea.vmem %s1, 376
  %191 = vst [vmem:[%s190] sm:$0xff] %v189

</llo_original>
